<compile_context>
chip_gen: v7x
topology: tpu7x:2x2x1
jax: 0.10.0
libtpu: 0.0.40
codegen_flags: <defaults>
</compile_context>

<pallas_src>
from functools import partial

import jax
import jax.numpy as jnp
from jax import lax
from jax.experimental import pallas as pl
from jax.experimental.pallas import tpu as pltpu


def _round_up(a, m):
    return -(-a // m) * m


def _conv_bn_relu_kernel(x_ref, w_ref, shift_ref, o_ref, *, ngroups, L_out, b_tile):
    """Fused Conv1d + folded-BN + ReLU.

    x_ref:     (b_tile, Lp2, stride*C_in) bf16  -- stride taps folded into lanes
    w_ref:     (ngroups, stride*C_in, C_out) bf16 -- BN-scale pre-folded, zero-padded taps
    shift_ref: (1, C_out) f32                   -- beta - mean * gamma/sqrt(var+eps)
    o_ref:     (b_tile, L_out, C_out) bf16      -- lane-dense output
    """
    for b in range(b_tile):                      # static unroll over batch rows in this tile
        # ngroups accumulating MXU matmuls, f32 accumulation, no patch materialization.
        acc = jnp.dot(x_ref[b, 0:L_out, :], w_ref[0],
                      preferred_element_type=jnp.float32)
        for g in range(1, ngroups):              # static unroll; sublane-offset slices only
            acc += jnp.dot(x_ref[b, g:g + L_out, :], w_ref[g],
                           preferred_element_type=jnp.float32)
        # Epilogue: shift + ReLU in f32 (scale already folded into the weights).
        o_ref[b] = jnp.maximum(acc + shift_ref[...], 0.0).astype(o_ref.dtype)


def conv_bn_relu(x_nlc, weight_oik, gamma, beta, running_mean, running_var, *,
                 stride, padding, eps=1e-5, target_rows=512):
    """One ConvModule (conv -> norm -> act) on channels-last bf16 input (N, L, C_in)."""
    N, L, C_in = x_nlc.shape
    C_out, C_in_w, K = weight_oik.shape
    assert C_in_w == C_in
    L_out = (L + 2 * padding - K) // stride + 1
    ngroups = -(-K // stride)                    # taps regrouped per folded row

    # Padded length: covers every (group, output-position) read, >= L + left pad,
    # and a multiple of `stride` so the fold-into-lanes reshape is exact.
    rows_needed = L_out + ngroups - 1
    L_pad = max(rows_needed * stride, L + padding)
    L_pad = _round_up(L_pad, stride)
    Lp2 = L_pad // stride

    x_pad = jnp.pad(x_nlc.astype(jnp.bfloat16),
                    ((0, 0), (padding, L_pad - L - padding), (0, 0)))
    # Free row-major reshape: x2[n, q, j*C_in:(j+1)*C_in] == x_pad[n, q*stride + j, :].
    x2 = x_pad.reshape(N, Lp2, stride * C_in)

    # Fold SyncBatchNorm (eval / running stats): scale goes INTO the weights (host side),
    # shift stays as an f32 vector for the kernel epilogue.
    inv = (gamma * lax.rsqrt(running_var + eps)).astype(jnp.float32)
    shift = (beta - running_mean * inv).reshape(1, C_out).astype(jnp.float32)

    # Grouped, zero-padded weights: tap k = g*stride + j lands at lanes [j*C_in, (j+1)*C_in)
    # of group g, matching x2's lane layout -> every matmul contracts the FULL lane extent.
    K_pad = ngroups * stride
    w_p = jnp.pad(weight_oik.astype(jnp.float32), ((0, 0), (0, 0), (0, K_pad - K)))
    w_g = jnp.transpose(w_p, (2, 1, 0)).reshape(ngroups, stride * C_in, C_out)
    w_g = (w_g * inv[None, None, :]).astype(jnp.bfloat16)

    # Batch tiling: biggest divisor of N giving <= target_rows output rows per step,
    # while keeping >= 2 "parallel" grid steps whenever N >= 2 (both v7x TensorCores busy).
    min_steps = min(2, N)
    b_tile = 1
    for d in range(1, N + 1):
        if N % d:
            continue
        if N // d < min_steps:
            continue
        if d > 1 and d * L_out > target_rows:
            continue
        b_tile = d
    grid = (N // b_tile,)

    # Per-step VMEM footprint (double-buffered I/O + resident weights), clamped so the
    # limit is safe on v7x's 64 MiB as well as v5e/v6e's 128 MiB.
    in_tile = b_tile * _round_up(Lp2, 16) * _round_up(stride * C_in, 128) * 2
    out_tile = b_tile * _round_up(L_out, 16) * _round_up(C_out, 128) * 2
    w_tile = ngroups * _round_up(stride * C_in, 16) * _round_up(C_out, 128) * 2
    vmem_needed = 2 * (in_tile + out_tile) + 2 * w_tile + 8 * _round_up(C_out, 128) * 4
    vmem_limit = int(min(max(2 * vmem_needed + (4 << 20), 16 << 20), 48 << 20))

    kernel = partial(_conv_bn_relu_kernel, ngroups=ngroups, L_out=L_out, b_tile=b_tile)
    out = pl.pallas_call(
        kernel,
        out_shape=jax.ShapeDtypeStruct((N, L_out, C_out), jnp.bfloat16),
        grid_spec=pltpu.PrefetchScalarGridSpec(
            num_scalar_prefetch=0,
            grid=grid,
            in_specs=[
                # 3D blocks: last two dims equal the full array dims -> always legal
                # under the (8,128) rule, even when Lp2 / L_out are tiny late stages.
                pl.BlockSpec((b_tile, Lp2, stride * C_in), lambda i: (i, 0, 0)),
                pl.BlockSpec((ngroups, stride * C_in, C_out), lambda i: (0, 0, 0)),
                pl.BlockSpec((1, C_out), lambda i: (0, 0)),
            ],
            out_specs=pl.BlockSpec((b_tile, L_out, C_out), lambda i: (i, 0, 0)),
        ),
        compiler_params=pltpu.CompilerParams(
            dimension_semantics=("parallel",),
            vmem_limit_bytes=vmem_limit,
        ),
    )(x2, w_g, shift)
    return out


def tdm_forward(x_ncl, stages, *, out_indices):
    """stages: list (per TDM stage) of lists (per ConvModule) of param dicts."""
    outs = []
    if 0 in out_indices:
        outs.append(x_ncl)
    x = jnp.transpose(x_ncl, (0, 2, 1)).astype(jnp.bfloat16)     # NCL -> NLC once
    for i, stage in enumerate(stages):
        for cm in stage:
            x = conv_bn_relu(x, cm["weight"], cm["gamma"], cm["beta"],
                             cm["mean"], cm["var"],
                             stride=cm["stride"], padding=cm["padding"])
        if (i + 1) in out_indices:
            # Convert only the requested outputs back to NCL/f32 (module contract);
            # the stage-to-stage hand-off stays channels-last bf16.
            outs.append(jnp.transpose(x, (0, 2, 1)).astype(jnp.float32))
    return outs[0] if len(outs) == 1 else tuple(outs)


# ----------------------------- pure-JAX reference -----------------------------

def _ref_conv_module(x_ncl, weight, gamma, beta, mean, var, *, stride, padding, eps=1e-5):
    y = lax.conv_general_dilated(
        x_ncl.astype(jnp.bfloat16), weight.astype(jnp.bfloat16),
        window_strides=(stride,), padding=[(padding, padding)],
        dimension_numbers=("NCH", "OIH", "NCH"),
        preferred_element_type=jnp.float32)
    inv = gamma * lax.rsqrt(var + eps)
    y = y * inv.reshape(1, -1, 1) + (beta - mean * inv).reshape(1, -1, 1)
    return jnp.maximum(y, 0.0).astype(jnp.bfloat16)


def tdm_reference(x_ncl, stages, *, out_indices):
    outs = []
    if 0 in out_indices:
        outs.append(x_ncl)
    x = x_ncl
    for i, stage in enumerate(stages):
        for cm in stage:
            x = _ref_conv_module(x, cm["weight"], cm["gamma"], cm["beta"],
                                 cm["mean"], cm["var"],
                                 stride=cm["stride"], padding=cm["padding"])
        if (i + 1) in out_indices:
            outs.append(x.astype(jnp.float32))
    return outs[0] if len(outs) == 1 else tuple(outs)


if __name__ == "__main__":
    # Small TDM config consistent with the module: Conv1d stages, k=3, stride=2, pad=1,
    # stage_layers=(1,1,1,1), out_indices=(0,1,2,3,4).  out_channels=128 keeps the test
    # small while keeping the kernel's output lane dimension dense (128 lanes).
    N, C_IN, L = 2, 32, 16
    stage_layers = (1, 1, 1, 1)
    kernel_sizes = (3, 3, 3, 3)
    strides = (2, 2, 2, 2)
    paddings = (1, 1, 1, 1)
    out_channels = (128, 128, 128, 128)
    out_indices = (0, 1, 2, 3, 4)

    key = jax.random.PRNGKey(0)
    key, kx = jax.random.split(key)
    x = jax.random.normal(kx, (N, C_IN, L), jnp.float32)

    stages = []
    c_in = C_IN
    for i in range(len(stage_layers)):
        stage = []
        specs = [(c_in, out_channels[i], kernel_sizes[i], strides[i], paddings[i])]
        specs += [(out_channels[i], out_channels[i], 1, 1, 0)] * (stage_layers[i] - 1)
        for (ci, co, k, s, p) in specs:
            key, kw, km, kv = jax.random.split(key, 4)
            std = (2.0 / (co * k)) ** 0.5          # kaiming_init (fan_out, relu)
            stage.append(dict(
                weight=std * jax.random.normal(kw, (co, ci, k), jnp.float32),
                gamma=jnp.ones((co,), jnp.float32),      # constant_init(norm, 1, bias=0)
                beta=jnp.zeros((co,), jnp.float32),
                # non-trivial running stats (as a trained SyncBatchNorm would carry) to
                # exercise the folded-BN path; fresh-init stats would be mean=0, var=1.
                mean=0.1 * jax.random.normal(km, (co,), jnp.float32),
                var=jax.random.uniform(kv, (co,), jnp.float32, minval=0.5, maxval=1.5),
                stride=s, padding=p,
            ))
        c_in = out_channels[i]
        stages.append(stage)

    outs = tdm_forward(x, stages, out_indices=out_indices)
    outs = jax.block_until_ready(outs)
    refs = tdm_reference(x, stages, out_indices=out_indices)

    # Expected output pyramid: (N,C_in,16), (N,128,8), (N,128,4), (N,128,2), (N,128,1).
    expected = [(N, C_IN, L)]
    l_cur = L
    for i in range(len(stage_layers)):
        l_cur = (l_cur + 2 * paddings[i] - kernel_sizes[i]) // strides[i] + 1
        expected.append((N, out_channels[i], l_cur))

    assert isinstance(outs, tuple) and len(outs) == len(out_indices)
    for idx, (o, r, e) in enumerate(zip(outs, refs, expected)):
        assert o.shape == e, (idx, o.shape, e)
        assert r.shape == e, (idx, r.shape, e)
        assert jnp.allclose(o, r, atol=5e-2, rtol=5e-2), f"mismatch vs reference at output {idx}"

    print("KERNEL_OK")
</pallas_src>

<mosaic_0001>
module attributes {stable_mosaic.version = 11 : i64} {
  func.func @_conv_bn_relu_kernel(%arg0: i32, %arg1: memref<1x9x64xbf16, #tpu.memory_space<vmem>>, %arg2: memref<2x64x128xbf16, #tpu.memory_space<vmem>>, %arg3: memref<1x128xf32, #tpu.memory_space<vmem>>, %arg4: memref<1x8x128xbf16, #tpu.memory_space<vmem>>) attributes {dimension_semantics = [#tpu.dimension_semantics<parallel>], iteration_bounds = array<i64: 2>, scalar_prefetch = 0 : i64, scratch_operands = 0 : i64, tpu.core_type = #tpu.core_type<tc>, window_params = [{transform_indices = @transform_0, window_bounds = array<i64: 1, 9, 64>}, {pipeline_mode = #tpu.pipeline_mode<synchronous>, transform_indices = @transform_1, window_bounds = array<i64: 2, 64, 128>}, {pipeline_mode = #tpu.pipeline_mode<synchronous>, transform_indices = @transform_2, window_bounds = array<i64: 1, 128>}, {transform_indices = @transform_3, window_bounds = array<i64: 1, 8, 128>}]} {
    %c0 = arith.constant 0 : index
    %c0_0 = arith.constant 0 : index
    %c0_1 = arith.constant 0 : index
    %0 = vector.load %arg1[%c0, %c0_0, %c0_1] : memref<1x9x64xbf16, #tpu.memory_space<vmem>>, vector<1x8x64xbf16>
    %1 = vector.shape_cast %0 : vector<1x8x64xbf16> to vector<8x64xbf16>
    %c0_2 = arith.constant 0 : index
    %c0_3 = arith.constant 0 : index
    %c0_4 = arith.constant 0 : index
    %2 = vector.load %arg2[%c0_2, %c0_3, %c0_4] : memref<2x64x128xbf16, #tpu.memory_space<vmem>>, vector<1x64x128xbf16>
    %3 = vector.shape_cast %2 : vector<1x64x128xbf16> to vector<64x128xbf16>
    %cst = arith.constant dense<0.000000e+00> : vector<8x128xf32>
    %4 = tpu.matmul %1, %3, %cst {dimension_numbers = #tpu.dot_dimension_numbers<[1], [0], [0], [1], [0, 0, 1, 1], [], []>} : vector<8x64xbf16>, vector<64x128xbf16>, vector<8x128xf32> -> vector<8x128xf32>
    %c0_5 = arith.constant 0 : index
    %c1 = arith.constant 1 : index
    %c0_6 = arith.constant 0 : index
    %5 = vector.load %arg1[%c0_5, %c1, %c0_6] : memref<1x9x64xbf16, #tpu.memory_space<vmem>>, vector<1x8x64xbf16>
    %6 = vector.shape_cast %5 : vector<1x8x64xbf16> to vector<8x64xbf16>
    %c1_7 = arith.constant 1 : index
    %c0_8 = arith.constant 0 : index
    %c0_9 = arith.constant 0 : index
    %7 = vector.load %arg2[%c1_7, %c0_8, %c0_9] : memref<2x64x128xbf16, #tpu.memory_space<vmem>>, vector<1x64x128xbf16>
    %8 = vector.shape_cast %7 : vector<1x64x128xbf16> to vector<64x128xbf16>
    %cst_10 = arith.constant dense<0.000000e+00> : vector<8x128xf32>
    %9 = tpu.matmul %6, %8, %cst_10 {dimension_numbers = #tpu.dot_dimension_numbers<[1], [0], [0], [1], [0, 0, 1, 1], [], []>} : vector<8x64xbf16>, vector<64x128xbf16>, vector<8x128xf32> -> vector<8x128xf32>
    %10 = arith.addf %4, %9 : vector<8x128xf32>
    %c0_11 = arith.constant 0 : index
    %c0_12 = arith.constant 0 : index
    %11 = vector.load %arg3[%c0_11, %c0_12] : memref<1x128xf32, #tpu.memory_space<vmem>>, vector<1x128xf32>
    %12 = vector.broadcast %11 : vector<1x128xf32> to vector<8x128xf32>
    %13 = arith.addf %10, %12 : vector<8x128xf32>
    %cst_13 = arith.constant 0.000000e+00 : f32
    %14 = vector.broadcast %cst_13 : f32 to vector<8x128xf32>
    %15 = arith.maximumf %13, %14 : vector<8x128xf32>
    %16 = arith.truncf %15 : vector<8x128xf32> to vector<8x128xbf16>
    %c0_14 = arith.constant 0 : index
    %c0_15 = arith.constant 0 : index
    %c0_16 = arith.constant 0 : index
    %17 = vector.load %arg4[%c0_14, %c0_15, %c0_16] : memref<1x8x128xbf16, #tpu.memory_space<vmem>>, vector<1x8x128xbf16>
    %18 = vector.shape_cast %17 : vector<1x8x128xbf16> to vector<8x128xbf16>
    %19 = vector.shape_cast %16 : vector<8x128xbf16> to vector<1x8x128xbf16>
    tpu.vector_store %arg4[%c0_14, %c0_15, %c0_16], %19 {strides = array<i32>} : memref<1x8x128xbf16, #tpu.memory_space<vmem>>, vector<1x8x128xbf16>,
    return
  }
  func.func @transform_0(%arg0: i32) -> (i32, i32, i32) {
    %c0_i32 = arith.constant 0 : i32
    %c0_i32_0 = arith.constant 0 : i32
    %c0_i32_1 = arith.constant 0 : i32
    return %arg0, %c0_i32, %c0_i32_0 : i32, i32, i32
  }
  func.func @transform_1(%arg0: i32) -> (i32, i32, i32) {
    %c0_i32 = arith.constant 0 : i32
    %c0_i32_0 = arith.constant 0 : i32
    %c0_i32_1 = arith.constant 0 : i32
    %c0_i32_2 = arith.constant 0 : i32
    return %c0_i32, %c0_i32_0, %c0_i32_1 : i32, i32, i32
  }
  func.func @transform_2(%arg0: i32) -> (i32, i32) {
    %c0_i32 = arith.constant 0 : i32
    %c0_i32_0 = arith.constant 0 : i32
    %c0_i32_1 = arith.constant 0 : i32
    return %c0_i32, %c0_i32_0 : i32, i32
  }
  func.func @transform_3(%arg0: i32) -> (i32, i32, i32) {
    %c0_i32 = arith.constant 0 : i32
    %c0_i32_0 = arith.constant 0 : i32
    %c0_i32_1 = arith.constant 0 : i32
    return %arg0, %c0_i32, %c0_i32_0 : i32, i32, i32
  }
}

</mosaic_0001>

<llo_original>
// kernel: tpu_custom_call.1
$region0: #{tpu_custom_call.1}
  #allocation0 [shape = 'u32[]', space=smem, size = 0x4, offset = 0x4, fixed_abs, tag = 'smem constant byte address 0x4 - core index']
  #allocation1 [shape = 'u32[144,128]{1,0:T(1,128)}', space=vmem, size = 0x12000, scoped, tag = 'internal scratch']
  %s0 = inlined_call_operand.vmem [shape: bf16[2,9,64], index: 0, kind: input, shape index: {}]
  %s1 = inlined_call_operand.hbm [shape: bf16[2,64,128], index: 1, kind: input, shape index: {}]
  %s2 = inlined_call_operand.vmem [shape: f32[1,128], index: 2, kind: input, shape index: {}]
  %s3 = inlined_call_operand.hbm [shape: bf16[2,8,128], index: 3, kind: output, shape index: {}]
  %s4 = sld [smem:[#allocation0]]
  $region49: #{tpu_custom_call.1} parent=0
    _
  %s6 = ssub.s32 1, %s4
  %s7 = scalar_select 0, %s6, %s4
  $region1: #{tpu_custom_call.1} parent=0
    #allocation2 [shape = 'u8[32768]{0}', space=vmem, size = 0x8000, scoped, tag = 'input window, operand 1, single buffered']
    #allocation3 [shape = 's32[2]{0}', space=sflag, size = 0x8, scoped, tag = 'scoped memory for tpu_custom_call.1']
    #allocation4 [shape = 's32[2]{0}', space=sflag, size = 0x8, scoped, tag = 'scoped memory for tpu_custom_call.1']
    #allocation5 [shape = 'u8[4096]{0}', space=vmem, size = 0x1000, scoped, tag = 'output window, operand 0']
    %8 = vsyncpa [#allocation3], 0
    %9 = vsyncpa [#allocation4], 0
    %s10 = scalar_lea.sflag [#allocation4], 1
    %11 = vsyncpa %s10, 0
    loop: start=0, step=1, limit=4
    $region2: #{tpu_custom_call.1} parent=1 // loop_pre_header
      _
    $region3: #{tpu_custom_call.1} parent=1 // loop_header
      %s13 = sphi 0, %s17
      %p14 = scmp.ge.s32.totalorder %s13, 4
      %s23 = sphi 0, %s25
      %s26 = sphi 0, %s23
      %s27 = sphi 0, %s26
      %s43 = sphi 0, %s27
      %s47 = sphi 0, %s47
      %s49 = sphi 0, %s47
      %s50 = sphi 0, %s49
      %s64 = sphi 0, %s50
      %s68 = sphi 0, %s68
      %s70 = sphi 0, %s68
      %s71 = sphi 0, %s70
      %s85 = sphi 0, %s71
      %s91 = sphi 0, %s93
      %s94 = sphi 0, %s91
      %s95 = sphi 0, %s94
      %s111 = sphi 0, %s95
    $region4: #{tpu_custom_call.1} parent=1 // loop_header_branch
      %16 = sbr.rel (%p14) target = $region8
    $region5: #{tpu_custom_call.1} parent=1 // loop_body
      %s18 = ssub.s32 %s13, 1
      %s19 = ssub.s32 %s13, 2
      %s20 = sadd.s32 %s13, 1
      %s21 = ssub.s32 %s13, %s20
      %p22 = scmp.eq.s32.totalorder %s21, 0
      %s24 = sadd.s32 %s23, 1
      %s25 = scalar_select %p22, %s23, %s24
      %p28 = pneg %p22
      %p29 = scmp.eq.s32.totalorder %s13, 1
      %p30 = por %p28, %p29
      %p31 = scmp.ne.s32.totalorder %s23, %s26
      %p32 = scmp.eq.s32.totalorder %s13, 0
      %p33 = por %p31, %p32
      %p34 = scmp.ne.s32.totalorder %s23, %s26
      %p35 = scmp.eq.s32.totalorder %s18, 1
      %p36 = por %p34, %p35
      %p37 = scmp.ne.s32.totalorder %s26, %s27
      %p38 = scmp.eq.s32.totalorder %s18, 0
      %p39 = por %p37, %p38
      %p40 = scmp.ne.s32.totalorder %s26, %s27
      %p41 = scmp.eq.s32.totalorder %s19, 1
      %p42 = por %p40, %p41
      %p44 = scmp.ne.s32.totalorder %s27, %s43
      %p45 = scmp.eq.s32.totalorder %s19, 0
      %p46 = por %p44, %p45
      %s48 = sadd.s32 %s47, 1
      %p51 = scmp.eq.s32.totalorder %s13, 1
      %p52 = scmp.ne.s32.totalorder %s47, %s49
      %p53 = scmp.eq.s32.totalorder %s13, 0
      %p54 = por %p52, %p53
      %p55 = scmp.ne.s32.totalorder %s47, %s49
      %p56 = scmp.eq.s32.totalorder %s18, 1
      %p57 = por %p55, %p56
      %p58 = scmp.ne.s32.totalorder %s49, %s50
      %p59 = scmp.eq.s32.totalorder %s18, 0
      %p60 = por %p58, %p59
      %p61 = scmp.ne.s32.totalorder %s49, %s50
      %p62 = scmp.eq.s32.totalorder %s19, 1
      %p63 = por %p61, %p62
      %p65 = scmp.ne.s32.totalorder %s50, %s64
      %p66 = scmp.eq.s32.totalorder %s19, 0
      %p67 = por %p65, %p66
      %s69 = sadd.s32 %s68, 1
      %p72 = scmp.eq.s32.totalorder %s13, 1
      %p73 = scmp.ne.s32.totalorder %s68, %s70
      %p74 = scmp.eq.s32.totalorder %s13, 0
      %p75 = por %p73, %p74
      %p76 = scmp.ne.s32.totalorder %s68, %s70
      %p77 = scmp.eq.s32.totalorder %s18, 1
      %p78 = por %p76, %p77
      %p79 = scmp.ne.s32.totalorder %s70, %s71
      %p80 = scmp.eq.s32.totalorder %s18, 0
      %p81 = por %p79, %p80
      %p82 = scmp.ne.s32.totalorder %s70, %s71
      %p83 = scmp.eq.s32.totalorder %s19, 1
      %p84 = por %p82, %p83
      %p86 = scmp.ne.s32.totalorder %s71, %s85
      %p87 = scmp.eq.s32.totalorder %s19, 0
      %p88 = por %p86, %p87
      %s89 = ssub.s32 %s13, %s20
      %p90 = scmp.eq.s32.totalorder %s89, 0
      %s92 = sadd.s32 %s91, 1
      %s93 = scalar_select %p90, %s91, %s92
      %p96 = pneg %p90
      %p97 = scmp.eq.s32.totalorder %s13, 1
      %p98 = por %p96, %p97
      %p99 = scmp.ne.s32.totalorder %s91, %s94
      %p100 = scmp.eq.s32.totalorder %s13, 0
      %p101 = por %p99, %p100
      %p102 = scmp.ne.s32.totalorder %s91, %s94
      %p103 = scmp.eq.s32.totalorder %s18, 1
      %p104 = por %p102, %p103
      %p105 = scmp.ne.s32.totalorder %s94, %s95
      %p106 = scmp.eq.s32.totalorder %s18, 0
      %p107 = por %p105, %p106
      %p108 = scmp.ne.s32.totalorder %s94, %s95
      %p109 = scmp.eq.s32.totalorder %s19, 1
      %p110 = por %p108, %p109
      %p112 = scmp.ne.s32.totalorder %s95, %s111
      %p113 = scmp.eq.s32.totalorder %s19, 0
      %p114 = por %p112, %p113
      %p115 = scmp.le.s32.totalorder 1, %s13
      %p116 = scmp.lt.s32.totalorder %s13, 3
      %p117 = pnand %p115, %p116
      %p118 = pneg %p117
      // Predicated region
      $region9: #{tpu_custom_call.1} parent=5 // pred_check
        _
      $region10: #{tpu_custom_call.1} parent=5 // pred_check_branch
        %120 = sbr.rel (%p117) target = $region12
      $region11: #{tpu_custom_call.1} parent=5 // pred_region
        %s121 = ssub.s32 %s13, 1
        // Predicated region
        $region13: #{tpu_custom_call.1} parent=11 // pred_check
          %p122 = pneg %p60
        $region14: #{tpu_custom_call.1} parent=11 // pred_check_branch
          %124 = sbr.rel (%p122) target = $region16
        $region15: #{tpu_custom_call.1} parent=11 // pred_region
          %s126 = ssub.s32 1024, 1024
          %127 = vsyncadd [#allocation3], %s126
          %s128 = sshll.u32 [#allocation2], 4
          %s129 = int_to_ptr.vmem [resolvable:$true] %s128
          %134 = dma.hbm_to_vmem [thread:$0]  %s1, 1024, %s129, [#allocation3], 64, 64, 4
        $region16: #{tpu_custom_call.1} parent=11 // pred_fallthru
          _
        // Predicated region
        $region17: #{tpu_custom_call.1} parent=11 // pred_check
          %p135 = pneg %p81
        $region18: #{tpu_custom_call.1} parent=11 // pred_check_branch
          %137 = sbr.rel (%p135) target = $region20
        $region19: #{tpu_custom_call.1} parent=11 // pred_region
          _
        $region20: #{tpu_custom_call.1} parent=11 // pred_fallthru
          _
      $region12: #{tpu_custom_call.1} parent=5 // pred_fallthru
        _
      %p138 = scmp.lt.s32.totalorder %s13, 2
      // Predicated region
      $region21: #{tpu_custom_call.1} parent=5 // pred_check
        %p139 = pneg %p138
      $region22: #{tpu_custom_call.1} parent=5 // pred_check_branch
        %141 = sbr.rel (%p139) target = $region24
      $region23: #{tpu_custom_call.1} parent=5 // pred_region
        // Predicated region
        $region25: #{tpu_custom_call.1} parent=23 // pred_check
          %p142 = pneg %p33
        $region26: #{tpu_custom_call.1} parent=23 // pred_check_branch
          %144 = sbr.rel (%p142) target = $region28
        $region27: #{tpu_custom_call.1} parent=23 // pred_region
          %p145 = scmp.lt.s32.totalorder %s13, 1
          %s146 = scalar_select %p145, %s13, 1
          %s147 = smul.addr %s146, 2
          %s148 = smul.addr %s147, 4
          %s149 = scalar_lea.vmem %s0, %s148
        $region28: #{tpu_custom_call.1} parent=23 // pred_fallthru
          _
      $region24: #{tpu_custom_call.1} parent=5 // pred_fallthru
        _
      %p150 = scmp.le.s32.totalorder 1, %s13
      %p151 = scmp.lt.s32.totalorder %s13, 3
      %p152 = pnand %p150, %p151
      %p153 = pneg %p152
      // Predicated region
      $region29: #{tpu_custom_call.1} parent=5 // pred_check
        _
      $region30: #{tpu_custom_call.1} parent=5 // pred_check_branch
        %155 = sbr.rel (%p152) target = $region32
      $region31: #{tpu_custom_call.1} parent=5 // pred_region
        %s156 = ssub.s32 %s13, 1
        // Predicated region
        $region33: #{tpu_custom_call.1} parent=31 // pred_check
          %p157 = pneg %p60
        $region34: #{tpu_custom_call.1} parent=31 // pred_check_branch
          %159 = sbr.rel (%p157) target = $region36
        $region35: #{tpu_custom_call.1} parent=31 // pred_region
          %160 = dma.done [#allocation3], 1024
        $region36: #{tpu_custom_call.1} parent=31 // pred_fallthru
          _
        %p161 = scmp.lt.s32.totalorder %s18, 1
        %s162 = scalar_select %p161, %s18, 1
        %s163 = smul.addr %s162, 2
        %s164 = smul.addr %s163, 4
        %s165 = scalar_lea.vmem %s0, %s164
        %p166 = pneg %p39
        %p167 = pneg %p36
        %p168 = pneg %p60
        %p169 = pneg %p57
        %p170 = pneg %p81
        %p171 = pneg %p78
        %p172 = pneg %p107
        %p173 = pneg %p104
        %s174 = sand.u32 %s94, 1
        %s175 = scalar_lea.sflag [#allocation4], %s174
        %s176 = sand.u32 %s94, 1
        %s177 = smul.addr %s176, 4
        %s178 = scalar_lea.vmem [#allocation5], %s177
        %p179 = scmp.lt.s32.totalorder %s18, 1
        %s180 = scalar_select %p179, %s18, 1
        %s181 = smul.addr %s180, 2
        %s182 = smul.addr %s181, 4
        %s183 = scalar_lea.vmem %s0, %s182
        %v185 = vld [vmem:[%s183] sm:$0xf]
        %v186 = vld [vmem:[#allocation2] sm:$0xf]
        %v187 = vld [vmem:[#allocation2 + $0x4] sm:$0xf]
        %v188 = vld [vmem:[#allocation2 + $0x8] sm:$0xf]
        %v189 = vld [vmem:[#allocation2 + $0xc] sm:$0xf]
        %v190 = vld [vmem:[#allocation2 + $0x10] sm:$0xf]
        %v191 = vld [vmem:[#allocation2 + $0x14] sm:$0xf]
        %v192 = vld [vmem:[#allocation2 + $0x18] sm:$0xf]
        %v193 = vld [vmem:[#allocation2 + $0x1c] sm:$0xf]
        %v194 = vld [vmem:[%s183 + $0x4] sm:$0x1]
        %s195 = scalar_lea.vmem [#allocation2], 32
        %v196 = vld [vmem:[%s195] sm:$0xf]
        %v197 = vld [vmem:[%s195 + $0x4] sm:$0xf]
        %v198 = vld [vmem:[%s195 + $0x8] sm:$0xf]
        %v199 = vld [vmem:[%s195 + $0xc] sm:$0xf]
        %v200 = vld [vmem:[%s195 + $0x10] sm:$0xf]
        %v201 = vld [vmem:[%s195 + $0x14] sm:$0xf]
        %v202 = vld [vmem:[%s195 + $0x18] sm:$0xf]
        %v203 = vld [vmem:[%s195 + $0x1c] sm:$0xf]
        %v206 = vunpack.c.l.b16 %v185
        %v207 = vunpack.c.l.b16 %v194
        %v208 = vpack.c.b16 %v207, %v206
        %v210 = vshrl.u32 %v208, 16
        %v212 = vshll.u32 %v208, 16
        %v214 = vrot.slane %v212, 1
        %v215 = vor.u32 %v210, %v214
        %v224 = vunpack.c.l.b16 %v196
        %v225 = vunpack.c.l.b16 %v197
        %v226 = vunpack.c.l.b16 %v198
        %v227 = vunpack.c.l.b16 %v199
        %v228 = vunpack.c.l.b16 %v200
        %v229 = vunpack.c.l.b16 %v201
        %v230 = vunpack.c.l.b16 %v202
        %v231 = vunpack.c.l.b16 %v203
        %v232 = vpack.c.b16 %v225, %v224
        %v233 = vpack.c.b16 %v227, %v226
        %v234 = vpack.c.b16 %v229, %v228
        %v235 = vpack.c.b16 %v231, %v230
        %vm240 = vcmask 523264
        %v242 = vsel %vm240, %v215, 0
        %244 = vmatprep.subr.bf16.mxu0 0
        %245 = vmatpush1.bf16.msra.mxu0 %v232
        %246 = vmatprep.subr.bf16.mxu0 0
        %247 = vmatpush1.bf16.msra.mxu0 %v233
        %248 = vmatprep.subr.bf16.mxu0 0
        %249 = vmatpush1.bf16.msra.mxu0 %v234
        %250 = vmatprep.subr.bf16.mxu0 0
        %251 = vmatpush1.bf16.msra.mxu0 %v235
        %252 = vmatprep.subr.bf16.mxu0 0
        %253 = vmatpush1.bf16.msra.mxu0 0
        %254 = vmatprep.subr.bf16.mxu0 0
        %255 = vmatpush1.bf16.msra.mxu0 0
        %256 = vmatprep.subr.bf16.mxu0 0
        %257 = vmatpush1.bf16.msra.mxu0 0
        %258 = vmatprep.subr.bf16.mxu0 0
        %259 = vmatpush1.bf16.msra.mxu0 0
        %260 = vmatprep.subr.bf16.mxu0 0
        %261 = vmatpush1.bf16.msra.mxu0 0
        %262 = vmatprep.subr.bf16.mxu0 0
        %263 = vmatpush1.bf16.msra.mxu0 0
        %264 = vmatprep.subr.bf16.mxu0 0
        %265 = vmatpush1.bf16.msra.mxu0 0
        %266 = vmatprep.subr.bf16.mxu0 0
        %267 = vmatpush1.bf16.msra.mxu0 0
        %268 = vmatprep.subr.bf16.mxu0 0
        %269 = vmatpush1.bf16.msra.mxu0 0
        %270 = vmatprep.subr.bf16.mxu0 0
        %271 = vmatpush1.bf16.msra.mxu0 0
        %272 = vmatprep.subr.bf16.mxu0 0
        %273 = vmatpush1.bf16.msra.mxu0 0
        %274 = vmatprep.subr.bf16.mxu0 0
        %275 = vmatpush1.bf16.msra.mxu0 0
        %276 = vmatprep.mubr.bf16.mxu0 0
        %277 = vmatmul.mubr.bf16.gmra.mrb[0].mxu0 %v242
        %v278 = vpop.f32.mrb[0].mxu0
        %v279 = vadd.f32 0.0, %v278
        %v280 = vpop.f32.mrb[0].mxu0
        %v281 = vpop.f32.mrb[0].mxu0
        %v282 = vpop.f32.mrb[0].mxu0
        %283 = vdwg.mxu0
        %v292 = vunpack.c.l.b16 %v186
        %v293 = vunpack.c.l.b16 %v187
        %v294 = vunpack.c.l.b16 %v188
        %v295 = vunpack.c.l.b16 %v189
        %v296 = vunpack.c.l.b16 %v190
        %v297 = vunpack.c.l.b16 %v191
        %v298 = vunpack.c.l.b16 %v192
        %v299 = vunpack.c.l.b16 %v193
        %v300 = vpack.c.b16 %v293, %v292
        %v301 = vpack.c.b16 %v295, %v294
        %v302 = vpack.c.b16 %v297, %v296
        %v303 = vpack.c.b16 %v299, %v298
        %v309 = vsel %vm240, %v185, 0
        %311 = vmatprep.subr.bf16.mxu0 0
        %312 = vmatpush1.bf16.msra.mxu0 %v300
        %313 = vmatprep.subr.bf16.mxu0 0
        %314 = vmatpush1.bf16.msra.mxu0 %v301
        %315 = vmatprep.subr.bf16.mxu0 0
        %316 = vmatpush1.bf16.msra.mxu0 %v302
        %317 = vmatprep.subr.bf16.mxu0 0
        %318 = vmatpush1.bf16.msra.mxu0 %v303
        %319 = vmatprep.subr.bf16.mxu0 0
        %320 = vmatpush1.bf16.msra.mxu0 0
        %321 = vmatprep.subr.bf16.mxu0 0
        %322 = vmatpush1.bf16.msra.mxu0 0
        %323 = vmatprep.subr.bf16.mxu0 0
        %324 = vmatpush1.bf16.msra.mxu0 0
        %325 = vmatprep.subr.bf16.mxu0 0
        %326 = vmatpush1.bf16.msra.mxu0 0
        %327 = vmatprep.subr.bf16.mxu0 0
        %328 = vmatpush1.bf16.msra.mxu0 0
        %329 = vmatprep.subr.bf16.mxu0 0
        %330 = vmatpush1.bf16.msra.mxu0 0
        %331 = vmatprep.subr.bf16.mxu0 0
        %332 = vmatpush1.bf16.msra.mxu0 0
        %333 = vmatprep.subr.bf16.mxu0 0
        %334 = vmatpush1.bf16.msra.mxu0 0
        %335 = vmatprep.subr.bf16.mxu0 0
        %336 = vmatpush1.bf16.msra.mxu0 0
        %337 = vmatprep.subr.bf16.mxu0 0
        %338 = vmatpush1.bf16.msra.mxu0 0
        %339 = vmatprep.subr.bf16.mxu0 0
        %340 = vmatpush1.bf16.msra.mxu0 0
        %341 = vmatprep.subr.bf16.mxu0 0
        %342 = vmatpush1.bf16.msra.mxu0 0
        %343 = vmatprep.mubr.bf16.mxu0 0
        %344 = vmatmul.mubr.bf16.gmra.mrb[0].mxu0 %v309
        %v345 = vpop.f32.mrb[0].mxu0
        %v346 = vadd.f32 %v279, %v345
        %v347 = vpop.f32.mrb[0].mxu0
        %v348 = vpop.f32.mrb[0].mxu0
        %v349 = vpop.f32.mrb[0].mxu0
        %350 = vdwg.mxu0
        %v351 = vld [vmem:[%s2] sm:$0x1]
        %v353 = vlaneseq
        %v354 = vshrl.u32 %v353, 7
        %v355 = vsub.s32 0, %v354
        %v356 = vrot.slane %v351, %v355
        %v358 = vadd.f32 %v346, %v356
        %v359 = vmax.f32 %v358, 0.0
        %v360 = vpack.c.bf16 %v359, %v359
        %361 = vst [vmem:[%s178] sm:$0xf] %v360
        %s362 = sand.u32 %s94, 1
        %s363 = scalar_lea.sflag [#allocation4], %s362
        %s364 = sand.u32 %s94, 1
        %s365 = smul.addr %s364, 4
        %s366 = scalar_lea.vmem [#allocation5], %s365
        // Predicated region
        $region37: #{tpu_custom_call.1} parent=31 // pred_check
          %p367 = pneg %p104
        $region38: #{tpu_custom_call.1} parent=31 // pred_check_branch
          %369 = sbr.rel (%p367) target = $region40
        $region39: #{tpu_custom_call.1} parent=31 // pred_region
          %s371 = ssub.s32 64, 64
          %372 = vsyncadd %s363, %s371
          %s373 = smul.addr %s18, 64
          %s374 = scalar_lea.hbm %s3, %s373
          %s376 = sshll.u32 %s366, 4
          %s377 = int_to_ptr.vmem [resolvable:$true] %s376
          %379 = dma.vmem_to_hbm [thread:$0]  %s377, 64, %s374, %s363
        $region40: #{tpu_custom_call.1} parent=31 // pred_fallthru
          _
      $region32: #{tpu_custom_call.1} parent=5 // pred_fallthru
        _
      %p380 = scmp.le.s32.totalorder 2, %s13
      // Predicated region
      $region41: #{tpu_custom_call.1} parent=5 // pred_check
        %p381 = pneg %p380
      $region42: #{tpu_custom_call.1} parent=5 // pred_check_branch
        %383 = sbr.rel (%p381) target = $region44
      $region43: #{tpu_custom_call.1} parent=5 // pred_region
        %s384 = ssub.s32 %s13, 2
        // Predicated region
        $region45: #{tpu_custom_call.1} parent=43 // pred_check
          %p385 = pneg %p110
        $region46: #{tpu_custom_call.1} parent=43 // pred_check_branch
          %387 = sbr.rel (%p385) target = $region48
        $region47: #{tpu_custom_call.1} parent=43 // pred_region
          %s388 = sand.u32 %s95, 1
          %s389 = scalar_lea.sflag [#allocation4], %s388
          %s390 = sand.u32 %s95, 1
          %s391 = smul.addr %s390, 4
          %s392 = scalar_lea.vmem [#allocation5], %s391
          %393 = dma.done %s389, 64
        $region48: #{tpu_custom_call.1} parent=43 // pred_fallthru
          _
      $region44: #{tpu_custom_call.1} parent=5 // pred_fallthru
        _
    $region6: #{tpu_custom_call.1} parent=1 // loop_footer
      %s17 = sadd.s32 1, %s13
    $region7: #{tpu_custom_call.1} parent=1 // loop_footer_branch
      %12 = sbr.rel target = $region3
    $region8: #{tpu_custom_call.1} parent=1 // loop_exit
      _
    %394 = vsyncpa [#allocation3], 1
    %s395 = scalar_lea.sflag [#allocation3], 1
    %396 = vsyncpa %s395, 1
    %397 = vsyncpa [#allocation4], 1
    %s398 = scalar_lea.sflag [#allocation4], 1
    %399 = vsyncpa %s398, 1

</llo_original>
